<compile_context>
chip_gen: v5e
topology: v5e:2x2
jax: 0.10.0
libtpu: 0.0.40
codegen_flags: <defaults>
</compile_context>

<pallas_src>
import functools

import jax
import jax.numpy as jnp
from jax.experimental import pallas as pl
from jax.experimental.pallas import tpu as pltpu


# --------------------------------------------------------------------------------------
# Kernels: one grid step computes a (B, tv) tile of the logits.
#   x_ref: (B, D_pad) bf16 resident activation
#   w_ref: (D_pad, tv) weight slice streamed from HBM (bf16 or int8 storage)
#   s_ref: (1, V_pad) f32 per-column dequant scales (resident, int8 path only)
#   b_ref: (1, V_pad) f32 bias (resident)
#   out_ref: (B, tv) f32 logits tile (lane-dense vocab axis)
# --------------------------------------------------------------------------------------
def _w2v_kernel_bf16(x_ref, w_ref, b_ref, out_ref, *, tv):
    off = pl.multiple_of(pl.program_id(0) * tv, 128)
    y = jnp.dot(x_ref[...], w_ref[...], preferred_element_type=jnp.float32)
    out_ref[...] = y + b_ref[:, pl.ds(off, tv)]


def _w2v_kernel_int8(x_ref, w_ref, s_ref, b_ref, out_ref, *, tv):
    off = pl.multiple_of(pl.program_id(0) * tv, 128)
    w = w_ref[...].astype(jnp.bfloat16)   # int8 storage -> bf16 MXU operand (exact cast)
    y = jnp.dot(x_ref[...], w, preferred_element_type=jnp.float32)
    out_ref[...] = y * s_ref[:, pl.ds(off, tv)] + b_ref[:, pl.ds(off, tv)]


# --------------------------------------------------------------------------------------
# Generation-aware VMEM budget + vocab tile selection (done once, at init).
# --------------------------------------------------------------------------------------
def _round_up(x, m):
    return -(-x // m) * m


def _vmem_budget_bytes():
    try:
        cap = int(pltpu.get_tpu_info().vmem_capacity_bytes)
    except Exception:  # pragma: no cover - interpret mode / older runtimes
        cap = 128 << 20
    if cap >= (128 << 20):     # v5e / v6e: 128 MiB physical VMEM
        return 96 << 20
    if cap >= (64 << 20):      # v7x: 64 MiB per TensorCore
        return 48 << 20
    return (cap * 3) // 4


def _pick_vocab_tile(vocab_len, d_pad, wbytes, max_batch, tv_request=None):
    budget = _vmem_budget_bytes()
    v128 = _round_up(vocab_len, 128)
    # Reserved: resident activation (2 bufs) + resident bias & scale (2 bufs each) + slack.
    reserve = 2 * max_batch * d_pad * 2 + 4 * v128 * 4 + (2 << 20)
    # Per-tv bytes: double-buffered weight tile + double-buffered f32 output tile.
    per_tv = 2 * d_pad * wbytes + 2 * max_batch * 4
    tv = (budget - reserve) // per_tv
    tv = max(128, (tv // 128) * 128)
    tv = min(tv, 8192)                      # >~1-2 MiB weight tiles: diminishing returns
    if tv_request is not None:
        tv = min(tv, max(128, (int(tv_request) // 128) * 128))
    tv = min(tv, v128)
    return int(tv)


# --------------------------------------------------------------------------------------
# One-time parameter preparation (model init, never per forward call).
# --------------------------------------------------------------------------------------
def prepare_linear_params(lin_weight, lin_bias, *, weight_dtype="int8",
                          tv_request=None, max_batch=256):
    """Transpose to (D, V), pad D to x32 and V to x tv, quantize/cast weight.

    Returns (weight, col_scale_or_None, bias_2d, tv).
      int8: weight int8 (D_pad, V_pad), col_scale f32 (1, V_pad)
      bf16: weight bf16 (D_pad, V_pad), col_scale None
    """
    V, D = lin_weight.shape
    d_pad = _round_up(D, 32)               # dense sublane packing for int8/bf16 weight DMA
    wbytes = 1 if weight_dtype == "int8" else 2
    tv = _pick_vocab_tile(V, d_pad, wbytes, max_batch, tv_request)
    v_pad = _round_up(V, tv)

    w_dv = jnp.transpose(lin_weight).astype(jnp.float32)            # (D, V)
    w_dv = jnp.pad(w_dv, ((0, d_pad - D), (0, v_pad - V)))          # zero pad: exact
    bias = jnp.pad(lin_bias.astype(jnp.float32), (0, v_pad - V)).reshape(1, v_pad)

    if weight_dtype == "int8":
        absmax = jnp.max(jnp.abs(w_dv), axis=0, keepdims=True)      # (1, v_pad)
        col_scale = jnp.where(absmax > 0, absmax / 127.0, 1.0).astype(jnp.float32)
        w_q = jnp.clip(jnp.round(w_dv / col_scale), -127, 127).astype(jnp.int8)
        return w_q, col_scale, bias, tv
    if weight_dtype == "bf16":
        return w_dv.astype(jnp.bfloat16), None, bias, tv
    raise ValueError(f"unsupported weight_dtype: {weight_dtype}")


# --------------------------------------------------------------------------------------
# Forward pass.
# --------------------------------------------------------------------------------------
@functools.partial(jax.jit, static_argnames=("model_type", "max_norm", "vocab_len", "tv"))
def word2vec_forward(ids, emb_table, w_dv, col_scale, bias_2d, *,
                     model_type="skipgram", max_norm=1.0, vocab_len=None, tv=2048):
    """ids: int32 (B,) for skipgram / (B, C) for cbow. Returns (B, vocab_len) f32 logits."""
    if model_type == "cbow":
        assert ids.ndim == 2, "cbow expects (B, C) context ids"
    else:
        assert ids.ndim == 1, "skipgram expects (B,) center-word ids"

    # ---- gather + max_norm renorm + (cbow) mean: tiny, fused by XLA with the gather ----
    x = jnp.take(emb_table, ids, axis=0).astype(jnp.float32)        # (B, D) or (B, C, D)
    if x.ndim == 2:
        x = x[:, None, :]
    # nn.Embedding(max_norm=...): rows with ||row||_2 > max_norm scaled by max_norm/(norm+1e-7).
    # TODO(synk): PyTorch also renorms the embedding table in place during forward; we only
    # scale the gathered copies (forward outputs match, parameter side effect not modeled).
    norm = jnp.sqrt(jnp.sum(x * x, axis=-1, keepdims=True))
    renorm = jnp.where(norm > max_norm, max_norm / (norm + 1e-7), 1.0)
    x = jnp.mean(x * renorm, axis=1)                                 # cbow mean / squeeze

    B, D = x.shape
    d_pad, v_pad = w_dv.shape
    assert v_pad % tv == 0
    if d_pad != D:
        x = jnp.pad(x, ((0, 0), (0, d_pad - D)))
    x_bf = x.astype(jnp.bfloat16)                                    # (B, d_pad)

    wbytes = jnp.dtype(w_dv.dtype).itemsize
    need = (2 * d_pad * tv * wbytes      # double-buffered weight tile
            + 2 * B * tv * 4             # double-buffered output tile
            + 2 * B * d_pad * 2          # resident activation
            + 4 * v_pad * 4)             # resident bias (+ scale)
    vmem_limit = int(min(max(2 * need, 16 << 20), _vmem_budget_bytes()))

    grid = (v_pad // tv,)
    x_spec = pl.BlockSpec((B, d_pad), lambda j: (0, 0))       # resident
    w_spec = pl.BlockSpec((d_pad, tv), lambda j: (0, j))      # streamed weight slice
    vec_spec = pl.BlockSpec((1, v_pad), lambda j: (0, 0))     # resident bias / scale
    out_spec = pl.BlockSpec((B, tv), lambda j: (0, j))        # lane-dense output tile
    cp = pltpu.CompilerParams(
        dimension_semantics=("parallel",),                    # megacore-shard vocab tiles
        vmem_limit_bytes=vmem_limit,
    )
    out_shape = jax.ShapeDtypeStruct((B, v_pad), jnp.float32)

    if col_scale is None:
        out = pl.pallas_call(
            functools.partial(_w2v_kernel_bf16, tv=tv),
            out_shape=out_shape,
            grid_spec=pltpu.PrefetchScalarGridSpec(
                num_scalar_prefetch=0, grid=grid,
                in_specs=[x_spec, w_spec, vec_spec],
                out_specs=out_spec),
            compiler_params=cp,
        )(x_bf, w_dv, bias_2d)
    else:
        out = pl.pallas_call(
            functools.partial(_w2v_kernel_int8, tv=tv),
            out_shape=out_shape,
            grid_spec=pltpu.PrefetchScalarGridSpec(
                num_scalar_prefetch=0, grid=grid,
                in_specs=[x_spec, w_spec, vec_spec, vec_spec],
                out_specs=out_spec),
            compiler_params=cp,
        )(x_bf, w_dv, col_scale, bias_2d)

    V = vocab_len if vocab_len is not None else v_pad
    return out if V == v_pad else out[:, :V]


# --------------------------------------------------------------------------------------
# Pure-JAX f32 reference for correctness checking.
# --------------------------------------------------------------------------------------
def _ref_forward(ids, emb_table, lin_weight, lin_bias, model_type, max_norm=1.0):
    x = jnp.take(emb_table, ids, axis=0)
    norm = jnp.sqrt(jnp.sum(x * x, axis=-1, keepdims=True))
    scale = jnp.where(norm > max_norm, max_norm / (norm + 1e-7), 1.0)
    x = x * scale
    if model_type == "cbow":
        x = jnp.mean(x, axis=1)
    return x @ lin_weight.T + lin_bias


if __name__ == "__main__":
    # Small, shape-consistent synthetic setup (module defaults scaled down).
    vocab_len = 2048
    embd_dim = 128
    batch = 8
    context = 4
    max_norm = 1.0

    key = jax.random.PRNGKey(0)
    k_emb, k_w, k_b, k_sg, k_cb = jax.random.split(key, 5)

    emb_table = jax.random.normal(k_emb, (vocab_len, embd_dim), jnp.float32)
    lin_weight = jax.random.normal(k_w, (vocab_len, embd_dim), jnp.float32) * 0.05
    lin_bias = jax.random.normal(k_b, (vocab_len,), jnp.float32) * 0.01

    # One-time init-side prep (never in the forward): int8 default, bf16 for comparison.
    w_q, col_scale, bias_q, tv_q = prepare_linear_params(
        lin_weight, lin_bias, weight_dtype="int8", max_batch=batch)
    w_bf, _, bias_bf, tv_bf = prepare_linear_params(
        lin_weight, lin_bias, weight_dtype="bf16", max_batch=batch)

    ids_sg = jax.random.randint(k_sg, (batch,), 0, vocab_len, jnp.int32)
    ids_cb = jax.random.randint(k_cb, (batch, context), 0, vocab_len, jnp.int32)

    ref_sg = _ref_forward(ids_sg, emb_table, lin_weight, lin_bias, "skipgram", max_norm)
    ref_cb = _ref_forward(ids_cb, emb_table, lin_weight, lin_bias, "cbow", max_norm)

    # skipgram, int8 weight stream
    out_sg = word2vec_forward(ids_sg, emb_table, w_q, col_scale, bias_q,
                              model_type="skipgram", max_norm=max_norm,
                              vocab_len=vocab_len, tv=tv_q)
    jax.block_until_ready(out_sg)
    assert out_sg.shape == (batch, vocab_len)
    assert jnp.allclose(out_sg, ref_sg, atol=5e-2, rtol=5e-2), \
        float(jnp.max(jnp.abs(out_sg - ref_sg)))

    # cbow, int8 weight stream
    out_cb = word2vec_forward(ids_cb, emb_table, w_q, col_scale, bias_q,
                              model_type="cbow", max_norm=max_norm,
                              vocab_len=vocab_len, tv=tv_q)
    jax.block_until_ready(out_cb)
    assert out_cb.shape == (batch, vocab_len)
    assert jnp.allclose(out_cb, ref_cb, atol=5e-2, rtol=5e-2), \
        float(jnp.max(jnp.abs(out_cb - ref_cb)))

    # skipgram, bf16 weight stream (fallback path)
    out_bf = word2vec_forward(ids_sg, emb_table, w_bf, None, bias_bf,
                              model_type="skipgram", max_norm=max_norm,
                              vocab_len=vocab_len, tv=tv_bf)
    jax.block_until_ready(out_bf)
    assert jnp.allclose(out_bf, ref_sg, atol=5e-2, rtol=5e-2), \
        float(jnp.max(jnp.abs(out_bf - ref_sg)))

    print("KERNEL_OK")
</pallas_src>

<mosaic_0001>
module attributes {stable_mosaic.version = 11 : i64} {
  func.func @_w2v_kernel_int8(%arg0: i32, %arg1: memref<8x128xbf16, #tpu.memory_space<vmem>>, %arg2: memref<128x2048xi8, #tpu.memory_space<vmem>>, %arg3: memref<1x2048xf32, #tpu.memory_space<vmem>>, %arg4: memref<1x2048xf32, #tpu.memory_space<vmem>>, %arg5: memref<8x2048xf32, #tpu.memory_space<vmem>>) attributes {dimension_semantics = [#tpu.dimension_semantics<parallel>], iteration_bounds = array<i64: 1>, scalar_prefetch = 0 : i64, scratch_operands = 0 : i64, tpu.core_type = #tpu.core_type<tc>, window_params = [{pipeline_mode = #tpu.pipeline_mode<synchronous>, transform_indices = @transform_0, window_bounds = array<i64: 8, 128>}, {transform_indices = @transform_1, window_bounds = array<i64: 128, 2048>}, {pipeline_mode = #tpu.pipeline_mode<synchronous>, transform_indices = @transform_2, window_bounds = array<i64: 1, 2048>}, {pipeline_mode = #tpu.pipeline_mode<synchronous>, transform_indices = @transform_3, window_bounds = array<i64: 1, 2048>}, {transform_indices = @transform_4, window_bounds = array<i64: 8, 2048>}]} {
    %c2048_i32 = arith.constant 2048 : i32
    %0 = arith.muli %arg0, %c2048_i32 : i32
    %1 = tpu.assume_multiple %0, 128 : i32
    %c0 = arith.constant 0 : index
    %c0_0 = arith.constant 0 : index
    %2 = vector.load %arg2[%c0, %c0_0] : memref<128x2048xi8, #tpu.memory_space<vmem>>, vector<128x2048xi8>
    %3 = arith.sitofp %2 : vector<128x2048xi8> to vector<128x2048xbf16>
    %c0_1 = arith.constant 0 : index
    %c0_2 = arith.constant 0 : index
    %4 = vector.load %arg1[%c0_1, %c0_2] : memref<8x128xbf16, #tpu.memory_space<vmem>>, vector<8x128xbf16>
    %cst = arith.constant dense<0.000000e+00> : vector<8x2048xf32>
    %5 = tpu.matmul %4, %3, %cst {dimension_numbers = #tpu.dot_dimension_numbers<[1], [0], [0], [1], [0, 0, 1, 1], [], []>} : vector<8x128xbf16>, vector<128x2048xbf16>, vector<8x2048xf32> -> vector<8x2048xf32>
    %c0_3 = arith.constant 0 : index
    %6 = arith.index_cast %1 : i32 to index
    %7 = vector.load %arg3[%c0_3, %6] : memref<1x2048xf32, #tpu.memory_space<vmem>>, vector<1x2048xf32>
    %8 = vector.broadcast %7 : vector<1x2048xf32> to vector<8x2048xf32>
    %9 = arith.mulf %5, %8 : vector<8x2048xf32>
    %c0_4 = arith.constant 0 : index
    %10 = arith.index_cast %1 : i32 to index
    %11 = vector.load %arg4[%c0_4, %10] : memref<1x2048xf32, #tpu.memory_space<vmem>>, vector<1x2048xf32>
    %12 = vector.broadcast %11 : vector<1x2048xf32> to vector<8x2048xf32>
    %13 = arith.addf %9, %12 : vector<8x2048xf32>
    %c0_5 = arith.constant 0 : index
    %c0_6 = arith.constant 0 : index
    %14 = vector.load %arg5[%c0_5, %c0_6] : memref<8x2048xf32, #tpu.memory_space<vmem>>, vector<8x2048xf32>
    tpu.vector_store %arg5[%c0_5, %c0_6], %13 {strides = array<i32>} : memref<8x2048xf32, #tpu.memory_space<vmem>>, vector<8x2048xf32>,
    return
  }
  func.func @transform_0(%arg0: i32) -> (i32, i32) {
    %c0_i32 = arith.constant 0 : i32
    %c0_i32_0 = arith.constant 0 : i32
    %c0_i32_1 = arith.constant 0 : i32
    return %c0_i32, %c0_i32_0 : i32, i32
  }
  func.func @transform_1(%arg0: i32) -> (i32, i32) {
    %c0_i32 = arith.constant 0 : i32
    %c0_i32_0 = arith.constant 0 : i32
    return %c0_i32, %arg0 : i32, i32
  }
  func.func @transform_2(%arg0: i32) -> (i32, i32) {
    %c0_i32 = arith.constant 0 : i32
    %c0_i32_0 = arith.constant 0 : i32
    %c0_i32_1 = arith.constant 0 : i32
    return %c0_i32, %c0_i32_0 : i32, i32
  }
  func.func @transform_3(%arg0: i32) -> (i32, i32) {
    %c0_i32 = arith.constant 0 : i32
    %c0_i32_0 = arith.constant 0 : i32
    %c0_i32_1 = arith.constant 0 : i32
    return %c0_i32, %c0_i32_0 : i32, i32
  }
  func.func @transform_4(%arg0: i32) -> (i32, i32) {
    %c0_i32 = arith.constant 0 : i32
    %c0_i32_0 = arith.constant 0 : i32
    return %c0_i32, %arg0 : i32, i32
  }
}

</mosaic_0001>

<llo_original>
// kernel: word2vec_forward.1
$region0: #{word2vec_forward.1}
  #allocation0 [shape = 'u32[]', space=smem, size = 0x4, offset = 0x4, fixed_abs, tag = 'smem constant byte address 0x4 - core index']
  #allocation1 [shape = 'u32[72,128]{1,0:T(1,128)}', space=vmem, size = 0x9000, scoped, tag = 'internal scratch']
  %s0 = inlined_call_operand.vmem [shape: bf16[8,128], index: 0, kind: input, shape index: {}]
  %s1 = inlined_call_operand.hbm [shape: s8[128,2048], index: 1, kind: input, shape index: {}]
  %s2 = inlined_call_operand.vmem [shape: f32[1,2048], index: 2, kind: input, shape index: {}]
  %s3 = inlined_call_operand.vmem [shape: f32[1,2048], index: 3, kind: input, shape index: {}]
  %s4 = inlined_call_operand.hbm [shape: f32[8,2048], index: 4, kind: output, shape index: {}]
  %s5 = sld [smem:[#allocation0]]
  $region30: #{word2vec_forward.1} parent=0
    _
  %s7 = ssub.s32 1, %s5
  %s8 = scalar_select 0, %s7, %s5
  $region1: #{word2vec_forward.1} parent=0
    #allocation2 [shape = 'u8[262144]{0}', space=vmem, size = 0x40000, scoped, tag = 'input window, operand 1, single buffered']
    #allocation3 [shape = 's32[1]{0}', space=sflag, size = 0x4, scoped, tag = 'scoped memory for word2vec_forward.1']
    #allocation4 [shape = 's32[1]{0}', space=sflag, size = 0x4, scoped, tag = 'scoped memory for word2vec_forward.1']
    #allocation5 [shape = 'u8[65536]{0}', space=vmem, size = 0x10000, scoped, tag = 'output window, operand 0, single buffered']
    %9 = vsyncpa [#allocation3], 0
    %10 = vsyncpa [#allocation4], 0
    // Predicated region
    $region2: #{word2vec_forward.1} parent=1 // pred_check
      _
    $region3: #{word2vec_forward.1} parent=1 // pred_check_branch
      %12 = sbr.rel (0) target = $region5
    $region4: #{word2vec_forward.1} parent=1 // pred_region
      _
    $region5: #{word2vec_forward.1} parent=1 // pred_fallthru
      _
    // Predicated region
    $region6: #{word2vec_forward.1} parent=1 // pred_check
      _
    $region7: #{word2vec_forward.1} parent=1 // pred_check_branch
      %14 = sbr.rel (0) target = $region9
    $region8: #{word2vec_forward.1} parent=1 // pred_region
      %16 = vsyncadd [#allocation3], 0
      %s17 = sshll.u32 %s1, 4
      %s18 = int_to_ptr.hbm [resolvable:$true] %s17
      %s19 = sshll.u32 [#allocation2], 4
      %s20 = int_to_ptr.vmem [resolvable:$true] %s19
      %25 = dma.hbm_to_vmem [thread:$0]  %s18, 8192, %s20, [#allocation3], 2048, 2048, 128
    $region9: #{word2vec_forward.1} parent=1 // pred_fallthru
      _
    // Predicated region
    $region10: #{word2vec_forward.1} parent=1 // pred_check
      _
    $region11: #{word2vec_forward.1} parent=1 // pred_check_branch
      %27 = sbr.rel (0) target = $region13
    $region12: #{word2vec_forward.1} parent=1 // pred_region
      _
    $region13: #{word2vec_forward.1} parent=1 // pred_fallthru
      _
    // Predicated region
    $region14: #{word2vec_forward.1} parent=1 // pred_check
      _
    $region15: #{word2vec_forward.1} parent=1 // pred_check_branch
      %29 = sbr.rel (0) target = $region17
    $region16: #{word2vec_forward.1} parent=1 // pred_region
      _
    $region17: #{word2vec_forward.1} parent=1 // pred_fallthru
      _
    // Predicated region
    $region18: #{word2vec_forward.1} parent=1 // pred_check
      _
    $region19: #{word2vec_forward.1} parent=1 // pred_check_branch
      %31 = sbr.rel (0) target = $region21
    $region20: #{word2vec_forward.1} parent=1 // pred_region
      %33 = dma.done [#allocation3], 8192
    $region21: #{word2vec_forward.1} parent=1 // pred_fallthru
      _
    %s34 = smul.u32 0, 2048
    %v35 = vld [vmem:[#allocation2] sm:$0xff]
    %v36 = vld [vmem:[#allocation2 + $0x8] sm:$0xff]
    %v37 = vld [vmem:[#allocation2 + $0x10] sm:$0xff]
    %v38 = vld [vmem:[#allocation2 + $0x18] sm:$0xff]
    %v39 = vld [vmem:[#allocation2 + $0x20] sm:$0xff]
    %v40 = vld [vmem:[#allocation2 + $0x28] sm:$0xff]
    %v41 = vld [vmem:[#allocation2 + $0x30] sm:$0xff]
    %v42 = vld [vmem:[#allocation2 + $0x38] sm:$0xff]
    %v43 = vld [vmem:[#allocation2 + $0x40] sm:$0xff]
    %v44 = vld [vmem:[#allocation2 + $0x48] sm:$0xff]
    %v45 = vld [vmem:[#allocation2 + $0x50] sm:$0xff]
    %v46 = vld [vmem:[#allocation2 + $0x58] sm:$0xff]
    %v47 = vld [vmem:[#allocation2 + $0x60] sm:$0xff]
    %v48 = vld [vmem:[#allocation2 + $0x68] sm:$0xff]
    %v49 = vld [vmem:[#allocation2 + $0x70] sm:$0xff]
    %v50 = vld [vmem:[#allocation2 + $0x78] sm:$0xff]
    %v51 = vld [vmem:[#allocation2 + $0x80] sm:$0xff]
    %v52 = vld [vmem:[#allocation2 + $0x88] sm:$0xff]
    %v53 = vld [vmem:[#allocation2 + $0x90] sm:$0xff]
    %v54 = vld [vmem:[#allocation2 + $0x98] sm:$0xff]
    %v55 = vld [vmem:[#allocation2 + $0xa0] sm:$0xff]
    %v56 = vld [vmem:[#allocation2 + $0xa8] sm:$0xff]
    %v57 = vld [vmem:[#allocation2 + $0xb0] sm:$0xff]
    %v58 = vld [vmem:[#allocation2 + $0xb8] sm:$0xff]
    %v59 = vld [vmem:[#allocation2 + $0xc0] sm:$0xff]
    %v60 = vld [vmem:[#allocation2 + $0xc8] sm:$0xff]
    %v61 = vld [vmem:[#allocation2 + $0xd0] sm:$0xff]
    %v62 = vld [vmem:[#allocation2 + $0xd8] sm:$0xff]
    %v63 = vld [vmem:[#allocation2 + $0xe0] sm:$0xff]
    %v64 = vld [vmem:[#allocation2 + $0xe8] sm:$0xff]
    %v65 = vld [vmem:[#allocation2 + $0xf0] sm:$0xff]
    %v66 = vld [vmem:[#allocation2 + $0xf8] sm:$0xff]
    %v67 = vld [vmem:[#allocation2 + $0x100] sm:$0xff]
    %v68 = vld [vmem:[#allocation2 + $0x108] sm:$0xff]
    %v69 = vld [vmem:[#allocation2 + $0x110] sm:$0xff]
    %v70 = vld [vmem:[#allocation2 + $0x118] sm:$0xff]
    %v71 = vld [vmem:[#allocation2 + $0x120] sm:$0xff]
    %v72 = vld [vmem:[#allocation2 + $0x128] sm:$0xff]
    %v73 = vld [vmem:[#allocation2 + $0x130] sm:$0xff]
    %v74 = vld [vmem:[#allocation2 + $0x138] sm:$0xff]
    %v75 = vld [vmem:[#allocation2 + $0x140] sm:$0xff]
    %v76 = vld [vmem:[#allocation2 + $0x148] sm:$0xff]
    %v77 = vld [vmem:[#allocation2 + $0x150] sm:$0xff]
    %v78 = vld [vmem:[#allocation2 + $0x158] sm:$0xff]
    %v79 = vld [vmem:[#allocation2 + $0x160] sm:$0xff]
    %v80 = vld [vmem:[#allocation2 + $0x168] sm:$0xff]
    %v81 = vld [vmem:[#allocation2 + $0x170] sm:$0xff]
    %v82 = vld [vmem:[#allocation2 + $0x178] sm:$0xff]
    %v83 = vld [vmem:[#allocation2 + $0x180] sm:$0xff]
    %v84 = vld [vmem:[#allocation2 + $0x188] sm:$0xff]
    %v85 = vld [vmem:[#allocation2 + $0x190] sm:$0xff]
    %v86 = vld [vmem:[#allocation2 + $0x198] sm:$0xff]
    %v87 = vld [vmem:[#allocation2 + $0x1a0] sm:$0xff]
    %v88 = vld [vmem:[#allocation2 + $0x1a8] sm:$0xff]
    %v89 = vld [vmem:[#allocation2 + $0x1b0] sm:$0xff]
    %v90 = vld [vmem:[#allocation2 + $0x1b8] sm:$0xff]
    %v91 = vld [vmem:[#allocation2 + $0x1c0] sm:$0xff]
    %v92 = vld [vmem:[#allocation2 + $0x1c8] sm:$0xff]
    %v93 = vld [vmem:[#allocation2 + $0x1d0] sm:$0xff]
    %v94 = vld [vmem:[#allocation2 + $0x1d8] sm:$0xff]
    %v95 = vld [vmem:[#allocation2 + $0x1e0] sm:$0xff]
    %v96 = vld [vmem:[#allocation2 + $0x1e8] sm:$0xff]
    %v97 = vld [vmem:[#allocation2 + $0x1f0] sm:$0xff]
    %v98 = vld [vmem:[#allocation2 + $0x1f8] sm:$0xff]
    %v99 = vunpack.c.0.s8 %v35
    %v100 = vunpack.c.0.s8 %v36
    %v101 = vunpack.c.0.s8 %v37
    %v102 = vunpack.c.0.s8 %v38
    %v103 = vunpack.c.0.s8 %v39
    %v104 = vunpack.c.0.s8 %v40
    %v105 = vunpack.c.0.s8 %v41
    %v106 = vunpack.c.0.s8 %v42
    %v107 = vunpack.c.0.s8 %v43
    %v108 = vunpack.c.0.s8 %v44
    %v109 = vunpack.c.0.s8 %v45
    %v110 = vunpack.c.0.s8 %v46
    %v111 = vunpack.c.0.s8 %v47
    %v112 = vunpack.c.0.s8 %v48
    %v113 = vunpack.c.0.s8 %v49
    %v114 = vunpack.c.0.s8 %v50
    %v115 = vunpack.c.1.s8 %v35
    %v116 = vunpack.c.1.s8 %v36
    %v117 = vunpack.c.1.s8 %v37
    %v118 = vunpack.c.1.s8 %v38
    %v119 = vunpack.c.1.s8 %v39
    %v120 = vunpack.c.1.s8 %v40
    %v121 = vunpack.c.1.s8 %v41
    %v122 = vunpack.c.1.s8 %v42
    %v123 = vunpack.c.1.s8 %v43
    %v124 = vunpack.c.1.s8 %v44
    %v125 = vunpack.c.1.s8 %v45
    %v126 = vunpack.c.1.s8 %v46
    %v127 = vunpack.c.1.s8 %v47
    %v128 = vunpack.c.1.s8 %v48
    %v129 = vunpack.c.1.s8 %v49
    %v130 = vunpack.c.1.s8 %v50
    %v131 = vunpack.c.2.s8 %v35
    %v132 = vunpack.c.2.s8 %v36
    %v133 = vunpack.c.2.s8 %v37
    %v134 = vunpack.c.2.s8 %v38
    %v135 = vunpack.c.2.s8 %v39
    %v136 = vunpack.c.2.s8 %v40
    %v137 = vunpack.c.2.s8 %v41
    %v138 = vunpack.c.2.s8 %v42
    %v139 = vunpack.c.2.s8 %v43
    %v140 = vunpack.c.2.s8 %v44
    %v141 = vunpack.c.2.s8 %v45
    %v142 = vunpack.c.2.s8 %v46
    %v143 = vunpack.c.2.s8 %v47
    %v144 = vunpack.c.2.s8 %v48
    %v145 = vunpack.c.2.s8 %v49
    %v146 = vunpack.c.2.s8 %v50
    %v147 = vunpack.c.3.s8 %v35
    %v148 = vunpack.c.3.s8 %v36
    %v149 = vunpack.c.3.s8 %v37
    %v150 = vunpack.c.3.s8 %v38
    %v151 = vunpack.c.3.s8 %v39
    %v152 = vunpack.c.3.s8 %v40
    %v153 = vunpack.c.3.s8 %v41
    %v154 = vunpack.c.3.s8 %v42
    %v155 = vunpack.c.3.s8 %v43
    %v156 = vunpack.c.3.s8 %v44
    %v157 = vunpack.c.3.s8 %v45
    %v158 = vunpack.c.3.s8 %v46
    %v159 = vunpack.c.3.s8 %v47
    %v160 = vunpack.c.3.s8 %v48
    %v161 = vunpack.c.3.s8 %v49
    %v162 = vunpack.c.3.s8 %v50
    %v163 = vunpack.c.0.s8 %v51
    %v164 = vunpack.c.0.s8 %v52
    %v165 = vunpack.c.0.s8 %v53
    %v166 = vunpack.c.0.s8 %v54
    %v167 = vunpack.c.0.s8 %v55
    %v168 = vunpack.c.0.s8 %v56
    %v169 = vunpack.c.0.s8 %v57
    %v170 = vunpack.c.0.s8 %v58
    %v171 = vunpack.c.0.s8 %v59
    %v172 = vunpack.c.0.s8 %v60
    %v173 = vunpack.c.0.s8 %v61
    %v174 = vunpack.c.0.s8 %v62
    %v175 = vunpack.c.0.s8 %v63
    %v176 = vunpack.c.0.s8 %v64
    %v177 = vunpack.c.0.s8 %v65
    %v178 = vunpack.c.0.s8 %v66
    %v179 = vunpack.c.1.s8 %v51
    %v180 = vunpack.c.1.s8 %v52
    %v181 = vunpack.c.1.s8 %v53
    %v182 = vunpack.c.1.s8 %v54
    %v183 = vunpack.c.1.s8 %v55
    %v184 = vunpack.c.1.s8 %v56
    %v185 = vunpack.c.1.s8 %v57
    %v186 = vunpack.c.1.s8 %v58
    %v187 = vunpack.c.1.s8 %v59
    %v188 = vunpack.c.1.s8 %v60
    %v189 = vunpack.c.1.s8 %v61
    %v190 = vunpack.c.1.s8 %v62
    %v191 = vunpack.c.1.s8 %v63
    %v192 = vunpack.c.1.s8 %v64
    %v193 = vunpack.c.1.s8 %v65
    %v194 = vunpack.c.1.s8 %v66
    %v195 = vunpack.c.2.s8 %v51
    %v196 = vunpack.c.2.s8 %v52
    %v197 = vunpack.c.2.s8 %v53
    %v198 = vunpack.c.2.s8 %v54
    %v199 = vunpack.c.2.s8 %v55
    %v200 = vunpack.c.2.s8 %v56
    %v201 = vunpack.c.2.s8 %v57
    %v202 = vunpack.c.2.s8 %v58
    %v203 = vunpack.c.2.s8 %v59
    %v204 = vunpack.c.2.s8 %v60
    %v205 = vunpack.c.2.s8 %v61
    %v206 = vunpack.c.2.s8 %v62
    %v207 = vunpack.c.2.s8 %v63
    %v208 = vunpack.c.2.s8 %v64
    %v209 = vunpack.c.2.s8 %v65
    %v210 = vunpack.c.2.s8 %v66
    %v211 = vunpack.c.3.s8 %v51
    %v212 = vunpack.c.3.s8 %v52
    %v213 = vunpack.c.3.s8 %v53
    %v214 = vunpack.c.3.s8 %v54
    %v215 = vunpack.c.3.s8 %v55
    %v216 = vunpack.c.3.s8 %v56
    %v217 = vunpack.c.3.s8 %v57
    %v218 = vunpack.c.3.s8 %v58
    %v219 = vunpack.c.3.s8 %v59
    %v220 = vunpack.c.3.s8 %v60
    %v221 = vunpack.c.3.s8 %v61
    %v222 = vunpack.c.3.s8 %v62
    %v223 = vunpack.c.3.s8 %v63
    %v224 = vunpack.c.3.s8 %v64
    %v225 = vunpack.c.3.s8 %v65
    %v226 = vunpack.c.3.s8 %v66
    %v227 = vunpack.c.0.s8 %v67
    %v228 = vunpack.c.0.s8 %v68
    %v229 = vunpack.c.0.s8 %v69
    %v230 = vunpack.c.0.s8 %v70
    %v231 = vunpack.c.0.s8 %v71
    %v232 = vunpack.c.0.s8 %v72
    %v233 = vunpack.c.0.s8 %v73
    %v234 = vunpack.c.0.s8 %v74
    %v235 = vunpack.c.0.s8 %v75
    %v236 = vunpack.c.0.s8 %v76
    %v237 = vunpack.c.0.s8 %v77
    %v238 = vunpack.c.0.s8 %v78
    %v239 = vunpack.c.0.s8 %v79
    %v240 = vunpack.c.0.s8 %v80
    %v241 = vunpack.c.0.s8 %v81
    %v242 = vunpack.c.0.s8 %v82
    %v243 = vunpack.c.1.s8 %v67
    %v244 = vunpack.c.1.s8 %v68
    %v245 = vunpack.c.1.s8 %v69
    %v246 = vunpack.c.1.s8 %v70
    %v247 = vunpack.c.1.s8 %v71
    %v248 = vunpack.c.1.s8 %v72
    %v249 = vunpack.c.1.s8 %v73
    %v250 = vunpack.c.1.s8 %v74
    %v251 = vunpack.c.1.s8 %v75
    %v252 = vunpack.c.1.s8 %v76
    %v253 = vunpack.c.1.s8 %v77
    %v254 = vunpack.c.1.s8 %v78
    %v255 = vunpack.c.1.s8 %v79
    %v256 = vunpack.c.1.s8 %v80
    %v257 = vunpack.c.1.s8 %v81
    %v258 = vunpack.c.1.s8 %v82
    %v259 = vunpack.c.2.s8 %v67
    %v260 = vunpack.c.2.s8 %v68
    %v261 = vunpack.c.2.s8 %v69
    %v262 = vunpack.c.2.s8 %v70
    %v263 = vunpack.c.2.s8 %v71
    %v264 = vunpack.c.2.s8 %v72
    %v265 = vunpack.c.2.s8 %v73
    %v266 = vunpack.c.2.s8 %v74
    %v267 = vunpack.c.2.s8 %v75
    %v268 = vunpack.c.2.s8 %v76
    %v269 = vunpack.c.2.s8 %v77
    %v270 = vunpack.c.2.s8 %v78
    %v271 = vunpack.c.2.s8 %v79
    %v272 = vunpack.c.2.s8 %v80
    %v273 = vunpack.c.2.s8 %v81
    %v274 = vunpack.c.2.s8 %v82
    %v275 = vunpack.c.3.s8 %v67
    %v276 = vunpack.c.3.s8 %v68
    %v277 = vunpack.c.3.s8 %v69
    %v278 = vunpack.c.3.s8 %v70
    %v279 = vunpack.c.3.s8 %v71
    %v280 = vunpack.c.3.s8 %v72
    %v281 = vunpack.c.3.s8 %v73
    %v282 = vunpack.c.3.s8 %v74
    %v283 = vunpack.c.3.s8 %v75
    %v284 = vunpack.c.3.s8 %v76
    %v285 = vunpack.c.3.s8 %v77
    %v286 = vunpack.c.3.s8 %v78
    %v287 = vunpack.c.3.s8 %v79
    %v288 = vunpack.c.3.s8 %v80
    %v289 = vunpack.c.3.s8 %v81
    %v290 = vunpack.c.3.s8 %v82
    %v291 = vunpack.c.0.s8 %v83
    %v292 = vunpack.c.0.s8 %v84
    %v293 = vunpack.c.0.s8 %v85
    %v294 = vunpack.c.0.s8 %v86
    %v295 = vunpack.c.0.s8 %v87
    %v296 = vunpack.c.0.s8 %v88
    %v297 = vunpack.c.0.s8 %v89
    %v298 = vunpack.c.0.s8 %v90
    %v299 = vunpack.c.0.s8 %v91
    %v300 = vunpack.c.0.s8 %v92
    %v301 = vunpack.c.0.s8 %v93
    %v302 = vunpack.c.0.s8 %v94
    %v303 = vunpack.c.0.s8 %v95
    %v304 = vunpack.c.0.s8 %v96
    %v305 = vunpack.c.0.s8 %v97
    %v306 = vunpack.c.0.s8 %v98
    %v307 = vunpack.c.1.s8 %v83
    %v308 = vunpack.c.1.s8 %v84
    %v309 = vunpack.c.1.s8 %v85
    %v310 = vunpack.c.1.s8 %v86
    %v311 = vunpack.c.1.s8 %v87
    %v312 = vunpack.c.1.s8 %v88
    %v313 = vunpack.c.1.s8 %v89
    %v314 = vunpack.c.1.s8 %v90
    %v315 = vunpack.c.1.s8 %v91
    %v316 = vunpack.c.1.s8 %v92
    %v317 = vunpack.c.1.s8 %v93
    %v318 = vunpack.c.1.s8 %v94
    %v319 = vunpack.c.1.s8 %v95
    %v320 = vunpack.c.1.s8 %v96
    %v321 = vunpack.c.1.s8 %v97
    %v322 = vunpack.c.1.s8 %v98
    %v323 = vunpack.c.2.s8 %v83
    %v324 = vunpack.c.2.s8 %v84
    %v325 = vunpack.c.2.s8 %v85
    %v326 = vunpack.c.2.s8 %v86
    %v327 = vunpack.c.2.s8 %v87
    %v328 = vunpack.c.2.s8 %v88
    %v329 = vunpack.c.2.s8 %v89
    %v330 = vunpack.c.2.s8 %v90
    %v331 = vunpack.c.2.s8 %v91
    %v332 = vunpack.c.2.s8 %v92
    %v333 = vunpack.c.2.s8 %v93
    %v334 = vunpack.c.2.s8 %v94
    %v335 = vunpack.c.2.s8 %v95
    %v336 = vunpack.c.2.s8 %v96
    %v337 = vunpack.c.2.s8 %v97
    %v338 = vunpack.c.2.s8 %v98
    %v339 = vunpack.c.3.s8 %v83
    %v340 = vunpack.c.3.s8 %v84
    %v341 = vunpack.c.3.s8 %v85
    %v342 = vunpack.c.3.s8 %v86
    %v343 = vunpack.c.3.s8 %v87
    %v344 = vunpack.c.3.s8 %v88
    %v345 = vunpack.c.3.s8 %v89
    %v346 = vunpack.c.3.s8 %v90
    %v347 = vunpack.c.3.s8 %v91
    %v348 = vunpack.c.3.s8 %v92
    %v349 = vunpack.c.3.s8 %v93
    %v350 = vunpack.c.3.s8 %v94
    %v351 = vunpack.c.3.s8 %v95
    %v352 = vunpack.c.3.s8 %v96
    %v353 = vunpack.c.3.s8 %v97
    %v354 = vunpack.c.3.s8 %v98
    %v355 = vcvt.s32.f32 %v99
    %v356 = vcvt.s32.f32 %v100
    %v357 = vcvt.s32.f32 %v101
    %v358 = vcvt.s32.f32 %v102
    %v359 = vcvt.s32.f32 %v103
    %v360 = vcvt.s32.f32 %v104
    %v361 = vcvt.s32.f32 %v105
    %v362 = vcvt.s32.f32 %v106
    %v363 = vcvt.s32.f32 %v107
    %v364 = vcvt.s32.f32 %v108
    %v365 = vcvt.s32.f32 %v109
    %v366 = vcvt.s32.f32 %v110
    %v367 = vcvt.s32.f32 %v111
    %v368 = vcvt.s32.f32 %v112
    %v369 = vcvt.s32.f32 %v113
    %v370 = vcvt.s32.f32 %v114
    %v371 = vcvt.s32.f32 %v115
    %v372 = vcvt.s32.f32 %v116
    %v373 = vcvt.s32.f32 %v117
    %v374 = vcvt.s32.f32 %v118
    %v375 = vcvt.s32.f32 %v119
    %v376 = vcvt.s32.f32 %v120
    %v377 = vcvt.s32.f32 %v121
    %v378 = vcvt.s32.f32 %v122
    %v379 = vcvt.s32.f32 %v123
    %v380 = vcvt.s32.f32 %v124
    %v381 = vcvt.s32.f32 %v125
    %v382 = vcvt.s32.f32 %v126
    %v383 = vcvt.s32.f32 %v127
    %v384 = vcvt.s32.f32 %v128
    %v385 = vcvt.s32.f32 %v129
    %v386 = vcvt.s32.f32 %v130
    %v387 = vcvt.s32.f32 %v131
    %v388 = vcvt.s32.f32 %v132
    %v389 = vcvt.s32.f32 %v133
    %v390 = vcvt.s32.f32 %v134
    %v391 = vcvt.s32.f32 %v135
    %v392 = vcvt.s32.f32 %v136
    %v393 = vcvt.s32.f32 %v137
    %v394 = vcvt.s32.f32 %v138
    %v395 = vcvt.s32.f32 %v139
    %v396 = vcvt.s32.f32 %v140
    %v397 = vcvt.s32.f32 %v141
    %v398 = vcvt.s32.f32 %v142
    %v399 = vcvt.s32.f32 %v143
    %v400 = vcvt.s32.f32 %v144
    %v401 = vcvt.s32.f32 %v145
    %v402 = vcvt.s32.f32 %v146
    %v403 = vcvt.s32.f32 %v147
    %v404 = vcvt.s32.f32 %v148
    %v405 = vcvt.s32.f32 %v149
    %v406 = vcvt.s32.f32 %v150
    %v407 = vcvt.s32.f32 %v151
    %v408 = vcvt.s32.f32 %v152
    %v409 = vcvt.s32.f32 %v153
    %v410 = vcvt.s32.f32 %v154
    %v411 = vcvt.s32.f32 %v155
    %v412 = vcvt.s32.f32 %v156
    %v413 = vcvt.s32.f32 %v157
    %v414 = vcvt.s32.f32 %v158
    %v415 = vcvt.s32.f32 %v159
    %v416 = vcvt.s32.f32 %v160
    %v417 = vcvt.s32.f32 %v161
    %v418 = vcvt.s32.f32 %v162
    %v419 = vcvt.s32.f32 %v163
    %v420 = vcvt.s32.f32 %v164
    %v421 = vcvt.s32.f32 %v165
    %v422 = vcvt.s32.f32 %v166
    %v423 = vcvt.s32.f32 %v167
    %v424 = vcvt.s32.f32 %v168
    %v425 = vcvt.s32.f32 %v169
    %v426 = vcvt.s32.f32 %v170
    %v427 = vcvt.s32.f32 %v171
    %v428 = vcvt.s32.f32 %v172
    %v429 = vcvt.s32.f32 %v173
    %v430 = vcvt.s32.f32 %v174
    %v431 = vcvt.s32.f32 %v175
    %v432 = vcvt.s32.f32 %v176
    %v433 = vcvt.s32.f32 %v177
    %v434 = vcvt.s32.f32 %v178
    %v435 = vcvt.s32.f32 %v179
    %v436 = vcvt.s32.f32 %v180
    %v437 = vcvt.s32.f32 %v181
    %v438 = vcvt.s32.f32 %v182
    %v439 = vcvt.s32.f32 %v183
    %v440 = vcvt.s32.f32 %v184
    %v441 = vcvt.s32.f32 %v185
    %v442 = vcvt.s32.f32 %v186
    %v443 = vcvt.s32.f32 %v187
    %v444 = vcvt.s32.f32 %v188
    %v445 = vcvt.s32.f32 %v189
    %v446 = vcvt.s32.f32 %v190
    %v447 = vcvt.s32.f32 %v191
    %v448 = vcvt.s32.f32 %v192
    %v449 = vcvt.s32.f32 %v193
    %v450 = vcvt.s32.f32 %v194
    %v451 = vcvt.s32.f32 %v195
    %v452 = vcvt.s32.f32 %v196
    %v453 = vcvt.s32.f32 %v197
    %v454 = vcvt.s32.f32 %v198
    %v455 = vcvt.s32.f32 %v199
    %v456 = vcvt.s32.f32 %v200
    %v457 = vcvt.s32.f32 %v201
    %v458 = vcvt.s32.f32 %v202
    %v459 = vcvt.s32.f32 %v203
    %v460 = vcvt.s32.f32 %v204
    %v461 = vcvt.s32.f32 %v205
    %v462 = vcvt.s32.f32 %v206
    %v463 = vcvt.s32.f32 %v207
    %v464 = vcvt.s32.f32 %v208
    %v465 = vcvt.s32.f32 %v209
    %v466 = vcvt.s32.f32 %v210
    %v467 = vcvt.s32.f32 %v211
    %v468 = vcvt.s32.f32 %v212
    %v469 = vcvt.s32.f32 %v213
    %v470 = vcvt.s32.f32 %v214
    %v471 = vcvt.s32.f32 %v215
    %v472 = vcvt.s32.f32 %v216
    %v473 = vcvt.s32.f32 %v217
    %v474 = vcvt.s32.f32 %v218
    %v475 = vcvt.s32.f32 %v219
    %v476 = vcvt.s32.f32 %v220
    %v477 = vcvt.s32.f32 %v221
    %v478 = vcvt.s32.f32 %v222
    %v479 = vcvt.s32.f32 %v223
    %v480 = vcvt.s32.f32 %v224
    %v481 = vcvt.s32.f32 %v225
    %v482 = vcvt.s32.f32 %v226
    %v483 = vcvt.s32.f32 %v227
    %v484 = vcvt.s32.f32 %v228
    %v485 = vcvt.s32.f32 %v229
    %v486 = vcvt.s32.f32 %v230
    %v487 = vcvt.s32.f32 %v231
    %v488 = vcvt.s32.f32 %v232
    %v489 = vcvt.s32.f32 %v233
    %v490 = vcvt.s32.f32 %v234
    %v491 = vcvt.s32.f32 %v235
    %v492 = vcvt.s32.f32 %v236
    %v493 = vcvt.s32.f32 %v237
    %v494 = vcvt.s32.f32 %v238
    %v495 = vcvt.s32.f32 %v239
    %v496 = vcvt.s32.f32 %v240
    %v497 = vcvt.s32.f32 %v241
    %v498 = vcvt.s32.f32 %v242
    %v499 = vcvt.s32.f32 %v243
    %v500 = vcvt.s32.f32 %v244
    %v501 = vcvt.s32.f32 %v245
    %v502 = vcvt.s32.f32 %v246
    %v503 = vcvt.s32.f32 %v247
    %v504 = vcvt.s32.f32 %v248
    %v505 = vcvt.s32.f32 %v249
    %v506 = vcvt.s32.f32 %v250
    %v507 = vcvt.s32.f32 %v251
    %v508 = vcvt.s32.f32 %v252
    %v509 = vcvt.s32.f32 %v253
    %v510 = vcvt.s32.f32 %v254
    %v511 = vcvt.s32.f32 %v255
    %v512 = vcvt.s32.f32 %v256
    %v513 = vcvt.s32.f32 %v257
    %v514 = vcvt.s32.f32 %v258
    %v515 = vcvt.s32.f32 %v259
    %v516 = vcvt.s32.f32 %v260
    %v517 = vcvt.s32.f32 %v261
    %v518 = vcvt.s32.f32 %v262
    %v519 = vcvt.s32.f32 %v263
    %v520 = vcvt.s32.f32 %v264
    %v521 = vcvt.s32.f32 %v265
    %v522 = vcvt.s32.f32 %v266
    %v523 = vcvt.s32.f32 %v267
    %v524 = vcvt.s32.f32 %v268
    %v525 = vcvt.s32.f32 %v269
    %v526 = vcvt.s32.f32 %v270
    %v527 = vcvt.s32.f32 %v271
    %v528 = vcvt.s32.f32 %v272
    %v529 = vcvt.s32.f32 %v273
    %v530 = vcvt.s32.f32 %v274
    %v531 = vcvt.s32.f32 %v275
    %v532 = vcvt.s32.f32 %v276
    %v533 = vcvt.s32.f32 %v277
    %v534 = vcvt.s32.f32 %v278
    %v535 = vcvt.s32.f32 %v279
    %v536 = vcvt.s32.f32 %v280
    %v537 = vcvt.s32.f32 %v281
    %v538 = vcvt.s32.f32 %v282
    %v539 = vcvt.s32.f32 %v283
    %v540 = vcvt.s32.f32 %v284
    %v541 = vcvt.s32.f32 %v285
    %v542 = vcvt.s32.f32 %v286
    %v543 = vcvt.s32.f32 %v287
    %v544 = vcvt.s32.f32 %v288
    %v545 = vcvt.s32.f32 %v289
    %v546 = vcvt.s32.f32 %v290
    %v547 = vcvt.s32.f32 %v291
    %v548 = vcvt.s32.f32 %v292
    %v549 = vcvt.s32.f32 %v293
    %v550 = vcvt.s32.f32 %v294
    %v551 = vcvt.s32.f32 %v295
    %v552 = vcvt.s32.f32 %v296
    %v553 = vcvt.s32.f32 %v297
    %v554 = vcvt.s32.f32 %v298
    %v555 = vcvt.s32.f32 %v299
    %v556 = vcvt.s32.f32 %v300
    %v557 = vcvt.s32.f32 %v301
    %v558 = vcvt.s32.f32 %v302
    %v559 = vcvt.s32.f32 %v303
    %v560 = vcvt.s32.f32 %v304
    %v561 = vcvt.s32.f32 %v305
    %v562 = vcvt.s32.f32 %v306
    %v563 = vcvt.s32.f32 %v307
    %v564 = vcvt.s32.f32 %v308
    %v565 = vcvt.s32.f32 %v309
    %v566 = vcvt.s32.f32 %v310
    %v567 = vcvt.s32.f32 %v311
    %v568 = vcvt.s32.f32 %v312
    %v569 = vcvt.s32.f32 %v313
    %v570 = vcvt.s32.f32 %v314
    %v571 = vcvt.s32.f32 %v315
    %v572 = vcvt.s32.f32 %v316
    %v573 = vcvt.s32.f32 %v317
    %v574 = vcvt.s32.f32 %v318
    %v575 = vcvt.s32.f32 %v319
    %v576 = vcvt.s32.f32 %v320
    %v577 = vcvt.s32.f32 %v321
    %v578 = vcvt.s32.f32 %v322
    %v579 = vcvt.s32.f32 %v323
    %v580 = vcvt.s32.f32 %v324
    %v581 = vcvt.s32.f32 %v325
    %v582 = vcvt.s32.f32 %v326
    %v583 = vcvt.s32.f32 %v327
    %v584 = vcvt.s32.f32 %v328
    %v585 = vcvt.s32.f32 %v329
    %v586 = vcvt.s32.f32 %v330
    %v587 = vcvt.s32.f32 %v331
    %v588 = vcvt.s32.f32 %v332
    %v589 = vcvt.s32.f32 %v333
    %v590 = vcvt.s32.f32 %v334
    %v591 = vcvt.s32.f32 %v335
    %v592 = vcvt.s32.f32 %v336
    %v593 = vcvt.s32.f32 %v337
    %v594 = vcvt.s32.f32 %v338
    %v595 = vcvt.s32.f32 %v339
    %v596 = vcvt.s32.f32 %v340
    %v597 = vcvt.s32.f32 %v341
    %v598 = vcvt.s32.f32 %v342
    %v599 = vcvt.s32.f32 %v343
    %v600 = vcvt.s32.f32 %v344
    %v601 = vcvt.s32.f32 %v345
    %v602 = vcvt.s32.f32 %v346
    %v603 = vcvt.s32.f32 %v347
    %v604 = vcvt.s32.f32 %v348
    %v605 = vcvt.s32.f32 %v349
    %v606 = vcvt.s32.f32 %v350
    %v607 = vcvt.s32.f32 %v351
    %v608 = vcvt.s32.f32 %v352
    %v609 = vcvt.s32.f32 %v353
    %v610 = vcvt.s32.f32 %v354
    %v611 = vpack.c.bf16 %v371, %v355
    %v612 = vpack.c.bf16 %v372, %v356
    %v613 = vpack.c.bf16 %v373, %v357
    %v614 = vpack.c.bf16 %v374, %v358
    %v615 = vpack.c.bf16 %v375, %v359
    %v616 = vpack.c.bf16 %v376, %v360
    %v617 = vpack.c.bf16 %v377, %v361
    %v618 = vpack.c.bf16 %v378, %v362
    %v619 = vpack.c.bf16 %v379, %v363
    %v620 = vpack.c.bf16 %v380, %v364
    %v621 = vpack.c.bf16 %v381, %v365
    %v622 = vpack.c.bf16 %v382, %v366
    %v623 = vpack.c.bf16 %v383, %v367
    %v624 = vpack.c.bf16 %v384, %v368
    %v625 = vpack.c.bf16 %v385, %v369
    %v626 = vpack.c.bf16 %v386, %v370
    %v627 = vpack.c.bf16 %v403, %v387
    %v628 = vpack.c.bf16 %v404, %v388
    %v629 = vpack.c.bf16 %v405, %v389
    %v630 = vpack.c.bf16 %v406, %v390
    %v631 = vpack.c.bf16 %v407, %v391
    %v632 = vpack.c.bf16 %v408, %v392
    %v633 = vpack.c.bf16 %v409, %v393
    %v634 = vpack.c.bf16 %v410, %v394
    %v635 = vpack.c.bf16 %v411, %v395
    %v636 = vpack.c.bf16 %v412, %v396
    %v637 = vpack.c.bf16 %v413, %v397
    %v638 = vpack.c.bf16 %v414, %v398
    %v639 = vpack.c.bf16 %v415, %v399
    %v640 = vpack.c.bf16 %v416, %v400
    %v641 = vpack.c.bf16 %v417, %v401
    %v642 = vpack.c.bf16 %v418, %v402
    %v643 = vpack.c.bf16 %v435, %v419
    %v644 = vpack.c.bf16 %v436, %v420
    %v645 = vpack.c.bf16 %v437, %v421
    %v646 = vpack.c.bf16 %v438, %v422
    %v647 = vpack.c.bf16 %v439, %v423
    %v648 = vpack.c.bf16 %v440, %v424
    %v649 = vpack.c.bf16 %v441, %v425
    %v650 = vpack.c.bf16 %v442, %v426
    %v651 = vpack.c.bf16 %v443, %v427
    %v652 = vpack.c.bf16 %v444, %v428
    %v653 = vpack.c.bf16 %v445, %v429
    %v654 = vpack.c.bf16 %v446, %v430
    %v655 = vpack.c.bf16 %v447, %v431
    %v656 = vpack.c.bf16 %v448, %v432
    %v657 = vpack.c.bf16 %v449, %v433
    %v658 = vpack.c.bf16 %v450, %v434
    %v659 = vpack.c.bf16 %v467, %v451
    %v660 = vpack.c.bf16 %v468, %v452
    %v661 = vpack.c.bf16 %v469, %v453
    %v662 = vpack.c.bf16 %v470, %v454
    %v663 = vpack.c.bf16 %v471, %v455
    %v664 = vpack.c.bf16 %v472, %v456
    %v665 = vpack.c.bf16 %v473, %v457
    %v666 = vpack.c.bf16 %v474, %v458
    %v667 = vpack.c.bf16 %v475, %v459
    %v668 = vpack.c.bf16 %v476, %v460
    %v669 = vpack.c.bf16 %v477, %v461
    %v670 = vpack.c.bf16 %v478, %v462
    %v671 = vpack.c.bf16 %v479, %v463
    %v672 = vpack.c.bf16 %v480, %v464
    %v673 = vpack.c.bf16 %v481, %v465
    %v674 = vpack.c.bf16 %v482, %v466
    %v675 = vpack.c.bf16 %v499, %v483
    %v676 = vpack.c.bf16 %v500, %v484
    %v677 = vpack.c.bf16 %v501, %v485
    %v678 = vpack.c.bf16 %v502, %v486
    %v679 = vpack.c.bf16 %v503, %v487
    %v680 = vpack.c.bf16 %v504, %v488
    %v681 = vpack.c.bf16 %v505, %v489
    %v682 = vpack.c.bf16 %v506, %v490
    %v683 = vpack.c.bf16 %v507, %v491
    %v684 = vpack.c.bf16 %v508, %v492
    %v685 = vpack.c.bf16 %v509, %v493
    %v686 = vpack.c.bf16 %v510, %v494
    %v687 = vpack.c.bf16 %v511, %v495
    %v688 = vpack.c.bf16 %v512, %v496
    %v689 = vpack.c.bf16 %v513, %v497
    %v690 = vpack.c.bf16 %v514, %v498
    %v691 = vpack.c.bf16 %v531, %v515
    %v692 = vpack.c.bf16 %v532, %v516
    %v693 = vpack.c.bf16 %v533, %v517
    %v694 = vpack.c.bf16 %v534, %v518
    %v695 = vpack.c.bf16 %v535, %v519
    %v696 = vpack.c.bf16 %v536, %v520
    %v697 = vpack.c.bf16 %v537, %v521
    %v698 = vpack.c.bf16 %v538, %v522
    %v699 = vpack.c.bf16 %v539, %v523
    %v700 = vpack.c.bf16 %v540, %v524
    %v701 = vpack.c.bf16 %v541, %v525
    %v702 = vpack.c.bf16 %v542, %v526
    %v703 = vpack.c.bf16 %v543, %v527
    %v704 = vpack.c.bf16 %v544, %v528
    %v705 = vpack.c.bf16 %v545, %v529
    %v706 = vpack.c.bf16 %v546, %v530
    %v707 = vpack.c.bf16 %v563, %v547
    %v708 = vpack.c.bf16 %v564, %v548
    %v709 = vpack.c.bf16 %v565, %v549
    %v710 = vpack.c.bf16 %v566, %v550
    %v711 = vpack.c.bf16 %v567, %v551
    %v712 = vpack.c.bf16 %v568, %v552
    %v713 = vpack.c.bf16 %v569, %v553
    %v714 = vpack.c.bf16 %v570, %v554
    %v715 = vpack.c.bf16 %v571, %v555
    %v716 = vpack.c.bf16 %v572, %v556
    %v717 = vpack.c.bf16 %v573, %v557
    %v718 = vpack.c.bf16 %v574, %v558
    %v719 = vpack.c.bf16 %v575, %v559
    %v720 = vpack.c.bf16 %v576, %v560
    %v721 = vpack.c.bf16 %v577, %v561
    %v722 = vpack.c.bf16 %v578, %v562
    %v723 = vpack.c.bf16 %v595, %v579
    %v724 = vpack.c.bf16 %v596, %v580
    %v725 = vpack.c.bf16 %v597, %v581
    %v726 = vpack.c.bf16 %v598, %v582
    %v727 = vpack.c.bf16 %v599, %v583
    %v728 = vpack.c.bf16 %v600, %v584
    %v729 = vpack.c.bf16 %v601, %v585
    %v730 = vpack.c.bf16 %v602, %v586
    %v731 = vpack.c.bf16 %v603, %v587
    %v732 = vpack.c.bf16 %v604, %v588
    %v733 = vpack.c.bf16 %v605, %v589
    %v734 = vpack.c.bf16 %v606, %v590
    %v735 = vpack.c.bf16 %v607, %v591
    %v736 = vpack.c.bf16 %v608, %v592
    %v737 = vpack.c.bf16 %v609, %v593
    %v738 = vpack.c.bf16 %v610, %v594
    %v739 = vld [vmem:[%s0] sm:$0xf]
    %740 = vmatpush.bf16.msra.mxu0 %v723
    %741 = vmatpush.bf16.msra.mxu0 %v707
    %742 = vmatpush.bf16.msra.mxu0 %v691
    %743 = vmatpush.bf16.msra.mxu0 %v675
    %744 = vmatpush.bf16.msra.mxu0 %v659
    %745 = vmatpush.bf16.msra.mxu0 %v643
    %746 = vmatpush.bf16.msra.mxu0 %v627
    %747 = vmatpush.bf16.msra.mxu0 %v611
    %748 = vmatmul.bf16.gmra.mxu0 %v739
    %v749 = vpop.f32.mrf.mxu0
    %v750 = vadd.f32 0.0, %v749
    %v751 = vpop.f32.mrf.mxu0
    %752 = vdwg.mxu0
    %753 = vmatpush.bf16.msra.mxu0 %v724
    %754 = vmatpush.bf16.msra.mxu0 %v708
    %755 = vmatpush.bf16.msra.mxu0 %v692
    %756 = vmatpush.bf16.msra.mxu0 %v676
    %757 = vmatpush.bf16.msra.mxu0 %v660
    %758 = vmatpush.bf16.msra.mxu0 %v644
    %759 = vmatpush.bf16.msra.mxu0 %v628
    %760 = vmatpush.bf16.msra.mxu0 %v612
    %761 = vmatmul.bf16.gmra.mxu0 %v739
    %v762 = vpop.f32.mrf.mxu0
    %v763 = vadd.f32 0.0, %v762
    %v764 = vpop.f32.mrf.mxu0
    %765 = vdwg.mxu0
    %766 = vmatpush.bf16.msra.mxu0 %v725
    %767 = vmatpush.bf16.msra.mxu0 %v709
    %768 = vmatpush.bf16.msra.mxu0 %v693
    %769 = vmatpush.bf16.msra.mxu0 %v677
    %770 = vmatpush.bf16.msra.mxu0 %v661
    %771 = vmatpush.bf16.msra.mxu0 %v645
    %772 = vmatpush.bf16.msra.mxu0 %v629
    %773 = vmatpush.bf16.msra.mxu0 %v613
    %774 = vmatmul.bf16.gmra.mxu0 %v739
    %v775 = vpop.f32.mrf.mxu0
    %v776 = vadd.f32 0.0, %v775
    %v777 = vpop.f32.mrf.mxu0
    %778 = vdwg.mxu0
    %779 = vmatpush.bf16.msra.mxu0 %v726
    %780 = vmatpush.bf16.msra.mxu0 %v710
    %781 = vmatpush.bf16.msra.mxu0 %v694
    %782 = vmatpush.bf16.msra.mxu0 %v678
    %783 = vmatpush.bf16.msra.mxu0 %v662
    %784 = vmatpush.bf16.msra.mxu0 %v646
    %785 = vmatpush.bf16.msra.mxu0 %v630
    %786 = vmatpush.bf16.msra.mxu0 %v614
    %787 = vmatmul.bf16.gmra.mxu0 %v739
    %v788 = vpop.f32.mrf.mxu0
    %v789 = vadd.f32 0.0, %v788
    %v790 = vpop.f32.mrf.mxu0
    %791 = vdwg.mxu0
    %792 = vmatpush.bf16.msra.mxu0 %v727
    %793 = vmatpush.bf16.msra.mxu0 %v711
    %794 = vmatpush.bf16.msra.mxu0 %v695
    %795 = vmatpush.bf16.msra.mxu0 %v679
    %796 = vmatpush.bf16.msra.mxu0 %v663
    %797 = vmatpush.bf16.msra.mxu0 %v647
    %798 = vmatpush.bf16.msra.mxu0 %v631
    %799 = vmatpush.bf16.msra.mxu0 %v615
    %800 = vmatmul.bf16.gmra.mxu0 %v739
    %v801 = vpop.f32.mrf.mxu0
    %v802 = vadd.f32 0.0, %v801
    %v803 = vpop.f32.mrf.mxu0
    %804 = vdwg.mxu0
    %805 = vmatpush.bf16.msra.mxu0 %v728
    %806 = vmatpush.bf16.msra.mxu0 %v712
    %807 = vmatpush.bf16.msra.mxu0 %v696
    %808 = vmatpush.bf16.msra.mxu0 %v680
    %809 = vmatpush.bf16.msra.mxu0 %v664
    %810 = vmatpush.bf16.msra.mxu0 %v648
    %811 = vmatpush.bf16.msra.mxu0 %v632
    %812 = vmatpush.bf16.msra.mxu0 %v616
    %813 = vmatmul.bf16.gmra.mxu0 %v739
    %v814 = vpop.f32.mrf.mxu0
    %v815 = vadd.f32 0.0, %v814
    %v816 = vpop.f32.mrf.mxu0
    %817 = vdwg.mxu0
    %818 = vmatpush.bf16.msra.mxu0 %v729
    %819 = vmatpush.bf16.msra.mxu0 %v713
    %820 = vmatpush.bf16.msra.mxu0 %v697
    %821 = vmatpush.bf16.msra.mxu0 %v681
    %822 = vmatpush.bf16.msra.mxu0 %v665
    %823 = vmatpush.bf16.msra.mxu0 %v649
    %824 = vmatpush.bf16.msra.mxu0 %v633
    %825 = vmatpush.bf16.msra.mxu0 %v617
    %826 = vmatmul.bf16.gmra.mxu0 %v739
    %v827 = vpop.f32.mrf.mxu0
    %v828 = vadd.f32 0.0, %v827
    %v829 = vpop.f32.mrf.mxu0
    %830 = vdwg.mxu0
    %831 = vmatpush.bf16.msra.mxu0 %v730
    %832 = vmatpush.bf16.msra.mxu0 %v714
    %833 = vmatpush.bf16.msra.mxu0 %v698
    %834 = vmatpush.bf16.msra.mxu0 %v682
    %835 = vmatpush.bf16.msra.mxu0 %v666
    %836 = vmatpush.bf16.msra.mxu0 %v650
    %837 = vmatpush.bf16.msra.mxu0 %v634
    %838 = vmatpush.bf16.msra.mxu0 %v618
    %839 = vmatmul.bf16.gmra.mxu0 %v739
    %v840 = vpop.f32.mrf.mxu0
    %v841 = vadd.f32 0.0, %v840
    %v842 = vpop.f32.mrf.mxu0
    %843 = vdwg.mxu0
    %844 = vmatpush.bf16.msra.mxu0 %v731
    %845 = vmatpush.bf16.msra.mxu0 %v715
    %846 = vmatpush.bf16.msra.mxu0 %v699
    %847 = vmatpush.bf16.msra.mxu0 %v683
    %848 = vmatpush.bf16.msra.mxu0 %v667
    %849 = vmatpush.bf16.msra.mxu0 %v651
    %850 = vmatpush.bf16.msra.mxu0 %v635
    %851 = vmatpush.bf16.msra.mxu0 %v619
    %852 = vmatmul.bf16.gmra.mxu0 %v739
    %v853 = vpop.f32.mrf.mxu0
    %v854 = vadd.f32 0.0, %v853
    %v855 = vpop.f32.mrf.mxu0
    %856 = vdwg.mxu0
    %857 = vmatpush.bf16.msra.mxu0 %v732
    %858 = vmatpush.bf16.msra.mxu0 %v716
    %859 = vmatpush.bf16.msra.mxu0 %v700
    %860 = vmatpush.bf16.msra.mxu0 %v684
    %861 = vmatpush.bf16.msra.mxu0 %v668
    %862 = vmatpush.bf16.msra.mxu0 %v652
    %863 = vmatpush.bf16.msra.mxu0 %v636
    %864 = vmatpush.bf16.msra.mxu0 %v620
    %865 = vmatmul.bf16.gmra.mxu0 %v739
    %v866 = vpop.f32.mrf.mxu0
    %v867 = vadd.f32 0.0, %v866
    %v868 = vpop.f32.mrf.mxu0
    %869 = vdwg.mxu0
    %870 = vmatpush.bf16.msra.mxu0 %v733
    %871 = vmatpush.bf16.msra.mxu0 %v717
    %872 = vmatpush.bf16.msra.mxu0 %v701
    %873 = vmatpush.bf16.msra.mxu0 %v685
    %874 = vmatpush.bf16.msra.mxu0 %v669
    %875 = vmatpush.bf16.msra.mxu0 %v653
    %876 = vmatpush.bf16.msra.mxu0 %v637
    %877 = vmatpush.bf16.msra.mxu0 %v621
    %878 = vmatmul.bf16.gmra.mxu0 %v739
    %v879 = vpop.f32.mrf.mxu0
    %v880 = vadd.f32 0.0, %v879
    %v881 = vpop.f32.mrf.mxu0
    %882 = vdwg.mxu0
    %883 = vmatpush.bf16.msra.mxu0 %v734
    %884 = vmatpush.bf16.msra.mxu0 %v718
    %885 = vmatpush.bf16.msra.mxu0 %v702
    %886 = vmatpush.bf16.msra.mxu0 %v686
    %887 = vmatpush.bf16.msra.mxu0 %v670
    %888 = vmatpush.bf16.msra.mxu0 %v654
    %889 = vmatpush.bf16.msra.mxu0 %v638
    %890 = vmatpush.bf16.msra.mxu0 %v622
    %891 = vmatmul.bf16.gmra.mxu0 %v739
    %v892 = vpop.f32.mrf.mxu0
    %v893 = vadd.f32 0.0, %v892
    %v894 = vpop.f32.mrf.mxu0
    %895 = vdwg.mxu0
    %896 = vmatpush.bf16.msra.mxu0 %v735
    %897 = vmatpush.bf16.msra.mxu0 %v719
    %898 = vmatpush.bf16.msra.mxu0 %v703
    %899 = vmatpush.bf16.msra.mxu0 %v687
    %900 = vmatpush.bf16.msra.mxu0 %v671
    %901 = vmatpush.bf16.msra.mxu0 %v655
    %902 = vmatpush.bf16.msra.mxu0 %v639
    %903 = vmatpush.bf16.msra.mxu0 %v623
    %904 = vmatmul.bf16.gmra.mxu0 %v739
    %v905 = vpop.f32.mrf.mxu0
    %v906 = vadd.f32 0.0, %v905
    %v907 = vpop.f32.mrf.mxu0
    %908 = vdwg.mxu0
    %909 = vmatpush.bf16.msra.mxu0 %v736
    %910 = vmatpush.bf16.msra.mxu0 %v720
    %911 = vmatpush.bf16.msra.mxu0 %v704
    %912 = vmatpush.bf16.msra.mxu0 %v688
    %913 = vmatpush.bf16.msra.mxu0 %v672
    %914 = vmatpush.bf16.msra.mxu0 %v656
    %915 = vmatpush.bf16.msra.mxu0 %v640
    %916 = vmatpush.bf16.msra.mxu0 %v624
    %917 = vmatmul.bf16.gmra.mxu0 %v739
    %v918 = vpop.f32.mrf.mxu0
    %v919 = vadd.f32 0.0, %v918
    %v920 = vpop.f32.mrf.mxu0
    %921 = vdwg.mxu0
    %922 = vmatpush.bf16.msra.mxu0 %v737
    %923 = vmatpush.bf16.msra.mxu0 %v721
    %924 = vmatpush.bf16.msra.mxu0 %v705
    %925 = vmatpush.bf16.msra.mxu0 %v689
    %926 = vmatpush.bf16.msra.mxu0 %v673
    %927 = vmatpush.bf16.msra.mxu0 %v657
    %928 = vmatpush.bf16.msra.mxu0 %v641
    %929 = vmatpush.bf16.msra.mxu0 %v625
    %930 = vmatmul.bf16.gmra.mxu0 %v739
    %v931 = vpop.f32.mrf.mxu0
    %v932 = vadd.f32 0.0, %v931
    %v933 = vpop.f32.mrf.mxu0
    %934 = vdwg.mxu0
    %935 = vmatpush.bf16.msra.mxu0 %v738
    %936 = vmatpush.bf16.msra.mxu0 %v722
    %937 = vmatpush.bf16.msra.mxu0 %v706
    %938 = vmatpush.bf16.msra.mxu0 %v690
    %939 = vmatpush.bf16.msra.mxu0 %v674
    %940 = vmatpush.bf16.msra.mxu0 %v658
    %941 = vmatpush.bf16.msra.mxu0 %v642
    %942 = vmatpush.bf16.msra.mxu0 %v626
    %943 = vmatmul.bf16.gmra.mxu0 %v739
    %v944 = vpop.f32.mrf.mxu0
    %v945 = vadd.f32 0.0, %v944
    %v946 = vpop.f32.mrf.mxu0
    %947 = vdwg.mxu0
    %s948 = sshra.s32 %s34, 7
    %s949 = sand.u32 %s34, 127
    %s950 = scalar_lea.vmem %s2, %s948
    %v951 = vld [vmem:[%s950] sm:$0xff]
    %v952 = vld [vmem:[%s950 + $0x8] sm:$0xff]
    %v955 = vperm.slane %v951, 0
    %v956 = vperm.slane %v951, 1
    %v957 = vperm.slane %v951, 2
    %v958 = vperm.slane %v951, 3
    %v959 = vperm.slane %v951, 4
    %v960 = vperm.slane %v951, 5
    %v961 = vperm.slane %v951, 6
    %v962 = vperm.slane %v951, 7
    %v963 = vperm.slane %v952, 0
    %v964 = vperm.slane %v952, 1
    %v965 = vperm.slane %v952, 2
    %v966 = vperm.slane %v952, 3
    %v967 = vperm.slane %v952, 4
    %v968 = vperm.slane %v952, 5
    %v969 = vperm.slane %v952, 6
    %v970 = vperm.slane %v952, 7
    %v987 = vmul.f32 %v750, %v955
    %v988 = vmul.f32 %v763, %v956
    %v989 = vmul.f32 %v776, %v957
    %v990 = vmul.f32 %v789, %v958
    %v991 = vmul.f32 %v802, %v959
    %v992 = vmul.f32 %v815, %v960
    %v993 = vmul.f32 %v828, %v961
    %v994 = vmul.f32 %v841, %v962
    %v995 = vmul.f32 %v854, %v963
    %v996 = vmul.f32 %v867, %v964
    %v997 = vmul.f32 %v880, %v965
    %v998 = vmul.f32 %v893, %v966
    %v999 = vmul.f32 %v906, %v967
    %v1000 = vmul.f32 %v919, %v968
    %v1001 = vmul.f32 %v932, %v969
    %v1002 = vmul.f32 %v945, %v970
    %s1003 = scalar_lea.vmem %s3, %s948
    %v1004 = vld [vmem:[%s1003] sm:$0xff]
    %v1005 = vld [vmem:[%s1003 + $0x8] sm:$0xff]
    %v1008 = vperm.slane %v1004, 0
    %v1009 = vperm.slane %v1004, 1
    %v1010 = vperm.slane %v1004, 2
    %v1011 = vperm.slane %v1004, 3
    %v1012 = vperm.slane %v1004, 4
    %v1013 = vperm.slane %v1004, 5
    %v1014 = vperm.slane %v1004, 6
    %v1015 = vperm.slane %v1004, 7
    %v1016 = vperm.slane %v1005, 0
    %v1017 = vperm.slane %v1005, 1
    %v1018 = vperm.slane %v1005, 2
    %v1019 = vperm.slane %v1005, 3
    %v1020 = vperm.slane %v1005, 4
    %v1021 = vperm.slane %v1005, 5
    %v1022 = vperm.slane %v1005, 6
    %v1023 = vperm.slane %v1005, 7
    %v1040 = vadd.f32 %v987, %v1008
    %v1041 = vadd.f32 %v988, %v1009
    %v1042 = vadd.f32 %v989, %v1010
    %v1043 = vadd.f32 %v990, %v1011
    %v1044 = vadd.f32 %v991, %v1012
    %v1045 = vadd.f32 %v992, %v1013
    %v1046 = vadd.f32 %v993, %v1014
    %v1047 = vadd.f32 %v994, %v1015
    %v1048 = vadd.f32 %v995, %v1016
    %v1049 = vadd.f32 %v996, %v1017
    %v1050 = vadd.f32 %v997, %v1018
    %v1051 = vadd.f32 %v998, %v1019
    %v1052 = vadd.f32 %v999, %v1020
    %v1053 = vadd.f32 %v1000, %v1021
    %v1054 = vadd.f32 %v1001, %v1022
    %v1055 = vadd.f32 %v1002, %v1023
    %1056 = vst [vmem:[#allocation5] sm:$0xff] %v1040
    %1057 = vst [vmem:[#allocation5 + $0x8] sm:$0xff] %v1041
    %1058 = vst [vmem:[#allocation5 + $0x10] sm:$0xff] %v1042
    %1059 = vst [vmem:[#allocation5 + $0x18] sm:$0xff] %v1043
    %1060 = vst [vmem:[#allocation5 + $0x20] sm:$0xff] %v1044
    %1061 = vst [vmem:[#allocation5 + $0x28] sm:$0xff] %v1045
    %1062 = vst [vmem:[#allocation5 + $0x30] sm:$0xff] %v1046
    %1063 = vst [vmem:[#allocation5 + $0x38] sm:$0xff] %v1047
    %1064 = vst [vmem:[#allocation5 + $0x40] sm:$0xff] %v1048
    %1065 = vst [vmem:[#allocation5 + $0x48] sm:$0xff] %v1049
    %1066 = vst [vmem:[#allocation5 + $0x50] sm:$0xff] %v1050
    %1067 = vst [vmem:[#allocation5 + $0x58] sm:$0xff] %v1051
    %1068 = vst [vmem:[#allocation5 + $0x60] sm:$0xff] %v1052
    %1069 = vst [vmem:[#allocation5 + $0x68] sm:$0xff] %v1053
    %1070 = vst [vmem:[#allocation5 + $0x70] sm:$0xff] %v1054
    %1071 = vst [vmem:[#allocation5 + $0x78] sm:$0xff] %v1055
    // Predicated region
    $region22: #{word2vec_forward.1} parent=1 // pred_check
      _
    $region23: #{word2vec_forward.1} parent=1 // pred_check_branch
      %1073 = sbr.rel (0) target = $region25
    $region24: #{word2vec_forward.1} parent=1 // pred_region
      %1075 = vsyncadd [#allocation4], 0
      %s1077 = sshll.u32 [#allocation5], 4
      %s1078 = int_to_ptr.vmem [resolvable:$true] %s1077
      %s1079 = sshll.u32 %s4, 4
      %s1080 = int_to_ptr.hbm [resolvable:$true] %s1079
      %1082 = dma.vmem_to_hbm [thread:$0]  %s1078, 2048, %s1080, [#allocation4]
    $region25: #{word2vec_forward.1} parent=1 // pred_fallthru
      _
    // Predicated region
    $region26: #{word2vec_forward.1} parent=1 // pred_check
      _
    $region27: #{word2vec_forward.1} parent=1 // pred_check_branch
      %1084 = sbr.rel (0) target = $region29
    $region28: #{word2vec_forward.1} parent=1 // pred_region
      %1086 = dma.done [#allocation4], 2048
    $region29: #{word2vec_forward.1} parent=1 // pred_fallthru
      _
    %1087 = vsyncpa [#allocation3], 1
    %1088 = vsyncpa [#allocation4], 1

</llo_original>
